<compile_context>
chip_gen: v5e
topology: v5e:2x2
jax: 0.10.0
libtpu: 0.0.40
codegen_flags: <defaults>
</compile_context>

<pallas_src>
import functools
import math

import jax
import jax.numpy as jnp
from jax.experimental import pallas as pl
from jax.experimental.pallas import tpu as pltpu


def _round_up(n, m):
    return ((n + m - 1) // m) * m


def _ccdis_kernel(*refs, num_layers, matmul_dtype):
    """Feature-major ccdis forward on one batch tile.

    refs = (y_ref [B, dy], x_ref [B, dx], *param_refs, out_ref [1, B]).

    param_refs layout (all 2-D, VMEM-resident across grid steps):
      num_layers == 1: (wy_t [1,dy], wx_t [1,dx], b [1,1])
      num_layers >= 2: (w0y_t [H,dy], w0x_t [H,dx], b0 [H,1],
                        (w_i_t [H,H], b_i [H,1]) * (L-2),
                        w_last_t [1,H], b_last [1,1])
    """
    y_ref, x_ref = refs[0], refs[1]
    out_ref = refs[-1]
    p = refs[2:-1]
    f32 = jnp.float32

    def qkt(a, b):
        # (M, K) x (N, K) -> (M, N), contracting the last dim of both operands
        # (flash-attention q @ k.T pattern): lets us consume the batch-major
        # input tile without ever materializing its transpose.
        return jax.lax.dot_general(
            a, b, (((1,), (1,)), ((), ())), preferred_element_type=f32)

    if num_layers == 1:
        wy_t, wx_t, b = p                              # [1,dy], [1,dx], [1,1]
        row = qkt(wy_t[...], y_ref[...]) + qkt(wx_t[...], x_ref[...]) + b[...]
    else:
        w0y_t, w0x_t, b0 = p[0], p[1], p[2]
        # First Linear with torch.cat fused away:
        #   h[H, B] = W0[:dy].T @ y.T + W0[dy:].T @ x.T + b0
        h = qkt(w0y_t[...], y_ref[...]) + qkt(w0x_t[...], x_ref[...]) + b0[...]
        h = jnp.maximum(h, 0.0)                        # ReLU, lane-dense f32

        idx = 3
        for _ in range(num_layers - 2):
            w_t, b_i = p[idx], p[idx + 1]              # [H,H], [H,1]
            idx += 2
            h = jnp.dot(w_t[...], h.astype(matmul_dtype),
                        preferred_element_type=f32) + b_i[...]
            h = jnp.maximum(h, 0.0)

        w_last_t, b_last = p[idx], p[idx + 1]          # [1,H], [1,1]
        row = jnp.dot(w_last_t[...], h.astype(matmul_dtype),
                      preferred_element_type=f32) + b_last[...]

    # row is [1, block_b]: lane-dense store (no masked partial stores).
    out_ref[...] = jax.nn.sigmoid(row).astype(out_ref.dtype)


def init_ccdis_params(key, num_of_output, layer, gan_hidden_dim):
    """Deterministic params mirroring ccdis.__init__ (PyTorch Linear default init)."""
    dims_in, dims_out = [], []
    d = num_of_output
    if layer == 1:
        dims_in, dims_out = [d], [1]
    else:
        for _ in range(layer - 1):
            dims_in.append(d)
            dims_out.append(gan_hidden_dim)
            d = gan_hidden_dim
        dims_in.append(d)
        dims_out.append(1)

    params = []
    for din, dout in zip(dims_in, dims_out):
        key, kw, kb = jax.random.split(key, 3)
        bound = 1.0 / math.sqrt(din)
        w = jax.random.uniform(kw, (din, dout), jnp.float32, -bound, bound)  # W^T layout
        b = jax.random.uniform(kb, (dout,), jnp.float32, -bound, bound)
        params.append((w, b))
    return params


def ccdis_forward(y, x, params, *, block_b=None, matmul_dtype=jnp.bfloat16):
    batch, y_dim = y.shape
    _, x_dim = x.shape
    num_layers = len(params)
    md = jnp.dtype(matmul_dtype)
    f32 = jnp.float32

    # Inputs fed in the matmul dtype (bf16 halves the dominant HBM read).
    y_in = y.astype(md)
    x_in = x.astype(md)

    # ---- Flatten params for the kernel, re-oriented feature-major.
    flat = []
    if num_layers == 1:
        w, b = params[0]                                       # [dy+dx, 1]
        flat += [w[:y_dim].T.astype(md), w[y_dim:].T.astype(md),
                 b.reshape(1, 1).astype(f32)]
    else:
        w0, b0 = params[0]
        flat += [w0[:y_dim].T.astype(md), w0[y_dim:].T.astype(md),
                 b0.reshape(-1, 1).astype(f32)]
        for w, b in params[1:-1]:
            flat += [w.T.astype(md), b.reshape(-1, 1).astype(f32)]
        w_last, b_last = params[-1]
        flat += [w_last.T.astype(md), b_last.reshape(1, 1).astype(f32)]

    # ---- Batch tiling: big tiles amortize per-step pipeline overhead.
    padded_min = _round_up(batch, 8)
    if block_b is None:
        block_b = 8192
    if block_b >= padded_min:
        block_b = padded_min               # single tile: block == full array
    else:
        block_b = _round_up(block_b, 128)  # multi-tile: lane/sublane aligned
    padded = _round_up(batch, block_b)
    if padded != batch:
        pad = padded - batch
        y_in = jnp.pad(y_in, ((0, pad), (0, 0)))
        x_in = jnp.pad(x_in, ((0, pad), (0, 0)))
    num_tiles = padded // block_b

    in_specs = [
        pl.BlockSpec((block_b, y_dim), lambda i: (i, 0)),
        pl.BlockSpec((block_b, x_dim), lambda i: (i, 0)),
    ]
    # Weights/biases: constant index_map -> fetched once, resident across steps.
    in_specs += [pl.BlockSpec(w.shape, lambda i: (0, 0)) for w in flat]
    # Lane-dense output: one [1, block_b] row per tile.
    out_spec = pl.BlockSpec((1, block_b), lambda i: (i, 0))

    # ---- Per-generation knobs.
    kind = ""
    try:
        kind = jax.devices()[0].device_kind.lower()
    except Exception:
        pass
    is_v7 = "v7" in kind
    core_parallel = getattr(pltpu, "CORE_PARALLEL", "parallel")
    if is_v7 and num_tiles >= 2:
        dim_sem = (core_parallel,)         # split the batch across v7x's 2 TCs
    else:
        dim_sem = ("parallel",)            # single-TC v5e/v6e
    vmem_limit = (48 if is_v7 else 64) * 1024 * 1024

    flops = sum(2 * batch * w.shape[0] * w.shape[1] for w, _ in params)
    bytes_accessed = (batch * (y_dim + x_dim) * md.itemsize + batch * 4
                      + sum(int(w.size) * w.dtype.itemsize for w in flat))
    cost = pl.CostEstimate(flops=int(flops), transcendentals=int(batch),
                           bytes_accessed=int(bytes_accessed))

    kernel = functools.partial(_ccdis_kernel, num_layers=num_layers,
                               matmul_dtype=md)

    out = pl.pallas_call(
        kernel,
        out_shape=jax.ShapeDtypeStruct((num_tiles, block_b), f32),
        grid=(num_tiles,),
        in_specs=in_specs,
        out_specs=out_spec,
        compiler_params=pltpu.CompilerParams(
            dimension_semantics=dim_sem,
            vmem_limit_bytes=vmem_limit,
        ),
        cost_estimate=cost,
    )(y_in, x_in, *flat)

    # Tile i holds rows [i*block_b, (i+1)*block_b) -> row-major reshape is the
    # original batch order; drop the padded tail.
    return out.reshape(padded, 1)[:batch]


def _reference_forward(y, x, params):
    r = jnp.concatenate([y, x], axis=1).astype(jnp.float32)
    for i, (w, b) in enumerate(params):
        r = r @ w + b
        if i < len(params) - 1:
            r = jnp.maximum(r, 0.0)
    return jax.nn.sigmoid(r)


if __name__ == "__main__":
    # Module config: num_of_output must equal dim(y) + dim(x) for forward() to work.
    layer = 3
    gan_hidden_dim = 32
    y_dim, x_dim = 4, 4
    num_of_output = y_dim + x_dim
    batch = 8

    key = jax.random.PRNGKey(0)
    ky, kx, kp = jax.random.split(key, 3)
    y = jax.random.normal(ky, (batch, y_dim), jnp.float32)
    x = jax.random.normal(kx, (batch, x_dim), jnp.float32)
    params = init_ccdis_params(kp, num_of_output, layer, gan_hidden_dim)

    ref = _reference_forward(y, x, params)

    # Exact-semantics check: f32 matmuls match the fp32 torch reference tightly.
    out_f32 = jax.block_until_ready(
        ccdis_forward(y, x, params, matmul_dtype=jnp.float32))
    assert out_f32.shape == (batch, 1)
    assert jnp.allclose(out_f32, ref, atol=1e-5, rtol=1e-5)

    # Perf config: bf16 inputs/weights on the MXU path, f32 accumulation.
    out_bf16 = jax.block_until_ready(
        ccdis_forward(y, x, params, matmul_dtype=jnp.bfloat16))
    assert out_bf16.shape == (batch, 1)
    assert jnp.allclose(out_bf16, ref, atol=2e-2, rtol=2e-2)

    # Multi-tile + ragged-tail path (grid > 1, lane-dense output reshape/slice).
    batch2 = 300
    ky2, kx2 = jax.random.split(ky)
    y2 = jax.random.normal(ky2, (batch2, y_dim), jnp.float32)
    x2 = jax.random.normal(kx2, (batch2, x_dim), jnp.float32)
    out2 = jax.block_until_ready(
        ccdis_forward(y2, x2, params, block_b=128, matmul_dtype=jnp.float32))
    ref2 = _reference_forward(y2, x2, params)
    assert out2.shape == (batch2, 1)
    assert jnp.allclose(out2, ref2, atol=1e-5, rtol=1e-5)

    # layer == 1 edge case (single fused Linear).
    params1 = init_ccdis_params(kp, num_of_output, 1, gan_hidden_dim)
    out1 = jax.block_until_ready(
        ccdis_forward(y, x, params1, matmul_dtype=jnp.float32))
    ref1 = _reference_forward(y, x, params1)
    assert jnp.allclose(out1, ref1, atol=1e-5, rtol=1e-5)

    print("KERNEL_OK")
</pallas_src>

<mosaic_0001>
module attributes {stable_mosaic.version = 11 : i64} {
  func.func @_ccdis_kernel(%arg0: i32, %arg1: memref<8x4xf32, #tpu.memory_space<vmem>>, %arg2: memref<8x4xf32, #tpu.memory_space<vmem>>, %arg3: memref<32x4xf32, #tpu.memory_space<vmem>>, %arg4: memref<32x4xf32, #tpu.memory_space<vmem>>, %arg5: memref<32x1xf32, #tpu.memory_space<vmem>>, %arg6: memref<32x32xf32, #tpu.memory_space<vmem>>, %arg7: memref<32x1xf32, #tpu.memory_space<vmem>>, %arg8: memref<1x32xf32, #tpu.memory_space<vmem>>, %arg9: memref<1x1xf32, #tpu.memory_space<vmem>>, %arg10: memref<1x8xf32, #tpu.memory_space<vmem>>) attributes {dimension_semantics = [#tpu.dimension_semantics<parallel>], iteration_bounds = array<i64: 1>, scalar_prefetch = 0 : i64, scratch_operands = 0 : i64, tpu.core_type = #tpu.core_type<tc>, window_params = [{transform_indices = @transform_0, window_bounds = array<i64: 8, 4>}, {transform_indices = @transform_1, window_bounds = array<i64: 8, 4>}, {pipeline_mode = #tpu.pipeline_mode<synchronous>, transform_indices = @transform_2, window_bounds = array<i64: 32, 4>}, {pipeline_mode = #tpu.pipeline_mode<synchronous>, transform_indices = @transform_3, window_bounds = array<i64: 32, 4>}, {pipeline_mode = #tpu.pipeline_mode<synchronous>, transform_indices = @transform_4, window_bounds = array<i64: 32, 1>}, {pipeline_mode = #tpu.pipeline_mode<synchronous>, transform_indices = @transform_5, window_bounds = array<i64: 32, 32>}, {pipeline_mode = #tpu.pipeline_mode<synchronous>, transform_indices = @transform_6, window_bounds = array<i64: 32, 1>}, {pipeline_mode = #tpu.pipeline_mode<synchronous>, transform_indices = @transform_7, window_bounds = array<i64: 1, 32>}, {pipeline_mode = #tpu.pipeline_mode<synchronous>, transform_indices = @transform_8, window_bounds = array<i64: 1, 1>}, {transform_indices = @transform_9, window_bounds = array<i64: 1, 8>}]} {
    %c0 = arith.constant 0 : index
    %c0_0 = arith.constant 0 : index
    %0 = vector.load %arg3[%c0, %c0_0] : memref<32x4xf32, #tpu.memory_space<vmem>>, vector<32x4xf32>
    %c0_1 = arith.constant 0 : index
    %c0_2 = arith.constant 0 : index
    %1 = vector.load %arg1[%c0_1, %c0_2] : memref<8x4xf32, #tpu.memory_space<vmem>>, vector<8x4xf32>
    %cst = arith.constant dense<0.000000e+00> : vector<32x8xf32>
    %2 = tpu.matmul %0, %1, %cst {dimension_numbers = #tpu.dot_dimension_numbers<[1], [1], [0], [0], [0, 0, 1, 0], [], []>} : vector<32x4xf32>, vector<8x4xf32>, vector<32x8xf32> -> vector<32x8xf32>
    %c0_3 = arith.constant 0 : index
    %c0_4 = arith.constant 0 : index
    %3 = vector.load %arg4[%c0_3, %c0_4] : memref<32x4xf32, #tpu.memory_space<vmem>>, vector<32x4xf32>
    %c0_5 = arith.constant 0 : index
    %c0_6 = arith.constant 0 : index
    %4 = vector.load %arg2[%c0_5, %c0_6] : memref<8x4xf32, #tpu.memory_space<vmem>>, vector<8x4xf32>
    %cst_7 = arith.constant dense<0.000000e+00> : vector<32x8xf32>
    %5 = tpu.matmul %3, %4, %cst_7 {dimension_numbers = #tpu.dot_dimension_numbers<[1], [1], [0], [0], [0, 0, 1, 0], [], []>} : vector<32x4xf32>, vector<8x4xf32>, vector<32x8xf32> -> vector<32x8xf32>
    %6 = arith.addf %2, %5 : vector<32x8xf32>
    %c0_8 = arith.constant 0 : index
    %c0_9 = arith.constant 0 : index
    %7 = vector.load %arg5[%c0_8, %c0_9] : memref<32x1xf32, #tpu.memory_space<vmem>>, vector<32x1xf32>
    %8 = vector.broadcast %7 : vector<32x1xf32> to vector<32x8xf32>
    %9 = arith.addf %6, %8 : vector<32x8xf32>
    %cst_10 = arith.constant 0.000000e+00 : f32
    %10 = vector.broadcast %cst_10 : f32 to vector<32x8xf32>
    %11 = arith.maximumf %9, %10 : vector<32x8xf32>
    %c0_11 = arith.constant 0 : index
    %c0_12 = arith.constant 0 : index
    %12 = vector.load %arg6[%c0_11, %c0_12] : memref<32x32xf32, #tpu.memory_space<vmem>>, vector<32x32xf32>
    %cst_13 = arith.constant dense<0.000000e+00> : vector<32x8xf32>
    %13 = tpu.matmul %12, %11, %cst_13 {dimension_numbers = #tpu.dot_dimension_numbers<[1], [0], [0], [1], [0, 0, 1, 1], [], []>} : vector<32x32xf32>, vector<32x8xf32>, vector<32x8xf32> -> vector<32x8xf32>
    %c0_14 = arith.constant 0 : index
    %c0_15 = arith.constant 0 : index
    %14 = vector.load %arg7[%c0_14, %c0_15] : memref<32x1xf32, #tpu.memory_space<vmem>>, vector<32x1xf32>
    %15 = vector.broadcast %14 : vector<32x1xf32> to vector<32x8xf32>
    %16 = arith.addf %13, %15 : vector<32x8xf32>
    %cst_16 = arith.constant 0.000000e+00 : f32
    %17 = vector.broadcast %cst_16 : f32 to vector<32x8xf32>
    %18 = arith.maximumf %16, %17 : vector<32x8xf32>
    %c0_17 = arith.constant 0 : index
    %c0_18 = arith.constant 0 : index
    %19 = vector.load %arg8[%c0_17, %c0_18] : memref<1x32xf32, #tpu.memory_space<vmem>>, vector<1x32xf32>
    %cst_19 = arith.constant dense<0.000000e+00> : vector<1x8xf32>
    %20 = tpu.matmul %19, %18, %cst_19 {dimension_numbers = #tpu.dot_dimension_numbers<[1], [0], [0], [1], [0, 0, 1, 1], [], []>} : vector<1x32xf32>, vector<32x8xf32>, vector<1x8xf32> -> vector<1x8xf32>
    %c0_20 = arith.constant 0 : index
    %c0_21 = arith.constant 0 : index
    %21 = vector.load %arg9[%c0_20, %c0_21] : memref<1x1xf32, #tpu.memory_space<vmem>>, vector<1x1xf32>
    %22 = vector.broadcast %21 : vector<1x1xf32> to vector<1x8xf32>
    %23 = arith.addf %20, %22 : vector<1x8xf32>
    %24 = arith.negf %23 : vector<1x8xf32>
    %25 = math.exp %24 : vector<1x8xf32>
    %cst_22 = arith.constant 1.000000e+00 : f32
    %26 = vector.broadcast %cst_22 : f32 to vector<1x8xf32>
    %27 = arith.addf %26, %25 : vector<1x8xf32>
    %28 = arith.divf %26, %27 : vector<1x8xf32>
    %c0_23 = arith.constant 0 : index
    %c0_24 = arith.constant 0 : index
    %29 = vector.load %arg10[%c0_23, %c0_24] : memref<1x8xf32, #tpu.memory_space<vmem>>, vector<1x8xf32>
    tpu.vector_store %arg10[%c0_23, %c0_24], %28 {strides = array<i32>} : memref<1x8xf32, #tpu.memory_space<vmem>>, vector<1x8xf32>,
    return
  }
  func.func @transform_0(%arg0: i32) -> (i32, i32) {
    %c0_i32 = arith.constant 0 : i32
    %c0_i32_0 = arith.constant 0 : i32
    return %arg0, %c0_i32 : i32, i32
  }
  func.func @transform_1(%arg0: i32) -> (i32, i32) {
    %c0_i32 = arith.constant 0 : i32
    %c0_i32_0 = arith.constant 0 : i32
    return %arg0, %c0_i32 : i32, i32
  }
  func.func @transform_2(%arg0: i32) -> (i32, i32) {
    %c0_i32 = arith.constant 0 : i32
    %c0_i32_0 = arith.constant 0 : i32
    %c0_i32_1 = arith.constant 0 : i32
    return %c0_i32, %c0_i32_0 : i32, i32
  }
  func.func @transform_3(%arg0: i32) -> (i32, i32) {
    %c0_i32 = arith.constant 0 : i32
    %c0_i32_0 = arith.constant 0 : i32
    %c0_i32_1 = arith.constant 0 : i32
    return %c0_i32, %c0_i32_0 : i32, i32
  }
  func.func @transform_4(%arg0: i32) -> (i32, i32) {
    %c0_i32 = arith.constant 0 : i32
    %c0_i32_0 = arith.constant 0 : i32
    %c0_i32_1 = arith.constant 0 : i32
    return %c0_i32, %c0_i32_0 : i32, i32
  }
  func.func @transform_5(%arg0: i32) -> (i32, i32) {
    %c0_i32 = arith.constant 0 : i32
    %c0_i32_0 = arith.constant 0 : i32
    %c0_i32_1 = arith.constant 0 : i32
    return %c0_i32, %c0_i32_0 : i32, i32
  }
  func.func @transform_6(%arg0: i32) -> (i32, i32) {
    %c0_i32 = arith.constant 0 : i32
    %c0_i32_0 = arith.constant 0 : i32
    %c0_i32_1 = arith.constant 0 : i32
    return %c0_i32, %c0_i32_0 : i32, i32
  }
  func.func @transform_7(%arg0: i32) -> (i32, i32) {
    %c0_i32 = arith.constant 0 : i32
    %c0_i32_0 = arith.constant 0 : i32
    %c0_i32_1 = arith.constant 0 : i32
    return %c0_i32, %c0_i32_0 : i32, i32
  }
  func.func @transform_8(%arg0: i32) -> (i32, i32) {
    %c0_i32 = arith.constant 0 : i32
    %c0_i32_0 = arith.constant 0 : i32
    %c0_i32_1 = arith.constant 0 : i32
    return %c0_i32, %c0_i32_0 : i32, i32
  }
  func.func @transform_9(%arg0: i32) -> (i32, i32) {
    %c0_i32 = arith.constant 0 : i32
    %c0_i32_0 = arith.constant 0 : i32
    return %arg0, %c0_i32 : i32, i32
  }
}

</mosaic_0001>

<llo_original>
// kernel: tpu_custom_call.1
$region0: #{tpu_custom_call.1}
  #allocation0 [shape = 'u32[]', space=smem, size = 0x4, offset = 0x4, fixed_abs, tag = 'smem constant byte address 0x4 - core index']
  #allocation1 [shape = 'u32[72,128]{1,0:T(1,128)}', space=vmem, size = 0x9000, scoped, tag = 'internal scratch']
  #allocation2 [shape = 'f32[1,1]{1,0:T(1,128)S(1)}', space=vmem, size = 0x200, scoped, tag = 'scoped memory for tpu_custom_call.1']
  %s0 = inlined_call_operand.vmem [shape: f32[8,4], index: 0, kind: input, shape index: {}]
  %s1 = inlined_call_operand.vmem [shape: f32[8,4], index: 1, kind: input, shape index: {}]
  %s2 = inlined_call_operand.vmem [shape: f32[32,4], index: 2, kind: input, shape index: {}]
  %s3 = inlined_call_operand.vmem [shape: f32[32,4], index: 3, kind: input, shape index: {}]
  %s4 = inlined_call_operand.vmem [shape: f32[32,1], index: 4, kind: input, shape index: {}]
  %s5 = inlined_call_operand.vmem [shape: f32[32,32], index: 5, kind: input, shape index: {}]
  %s6 = inlined_call_operand.vmem [shape: f32[32,1], index: 6, kind: input, shape index: {}]
  %s7 = inlined_call_operand.vmem [shape: f32[1,32], index: 7, kind: input, shape index: {}]
  %s8 = inlined_call_operand.<no memory space> [shape: f32[1,1], index: 8, kind: input, shape index: {}]
  %s9 = inlined_call_operand.hbm [shape: f32[1,8], index: 9, kind: output, shape index: {}]
  %s10 = sld [smem:[#allocation0]]
  $region46: #{tpu_custom_call.1} parent=0
    _
  %s12 = ssub.s32 1, %s10
  %s13 = scalar_select 0, %s12, %s10
  %v14 = vstv %s8
  %15 = vst [vmem:[#allocation2] sm:$0x1] %v14
  $region1: #{tpu_custom_call.1} parent=0
    #allocation3 [shape = 'u8[512]{0}', space=vmem, size = 0x400, scoped, tag = 'output window, operand 0, single buffered']
    #allocation4 [shape = 's32[1]{0}', space=sflag, size = 0x4, scoped, tag = 'scoped memory for tpu_custom_call.1']
    %16 = vsyncpa [#allocation4], 0
    // Predicated region
    $region2: #{tpu_custom_call.1} parent=1 // pred_check
      _
    $region3: #{tpu_custom_call.1} parent=1 // pred_check_branch
      %18 = sbr.rel (0) target = $region5
    $region4: #{tpu_custom_call.1} parent=1 // pred_region
      _
    $region5: #{tpu_custom_call.1} parent=1 // pred_fallthru
      _
    // Predicated region
    $region6: #{tpu_custom_call.1} parent=1 // pred_check
      _
    $region7: #{tpu_custom_call.1} parent=1 // pred_check_branch
      %20 = sbr.rel (0) target = $region9
    $region8: #{tpu_custom_call.1} parent=1 // pred_region
      _
    $region9: #{tpu_custom_call.1} parent=1 // pred_fallthru
      _
    // Predicated region
    $region10: #{tpu_custom_call.1} parent=1 // pred_check
      _
    $region11: #{tpu_custom_call.1} parent=1 // pred_check_branch
      %22 = sbr.rel (0) target = $region13
    $region12: #{tpu_custom_call.1} parent=1 // pred_region
      _
    $region13: #{tpu_custom_call.1} parent=1 // pred_fallthru
      _
    // Predicated region
    $region14: #{tpu_custom_call.1} parent=1 // pred_check
      _
    $region15: #{tpu_custom_call.1} parent=1 // pred_check_branch
      %24 = sbr.rel (0) target = $region17
    $region16: #{tpu_custom_call.1} parent=1 // pred_region
      _
    $region17: #{tpu_custom_call.1} parent=1 // pred_fallthru
      _
    // Predicated region
    $region18: #{tpu_custom_call.1} parent=1 // pred_check
      _
    $region19: #{tpu_custom_call.1} parent=1 // pred_check_branch
      %26 = sbr.rel (0) target = $region21
    $region20: #{tpu_custom_call.1} parent=1 // pred_region
      _
    $region21: #{tpu_custom_call.1} parent=1 // pred_fallthru
      _
    // Predicated region
    $region22: #{tpu_custom_call.1} parent=1 // pred_check
      _
    $region23: #{tpu_custom_call.1} parent=1 // pred_check_branch
      %28 = sbr.rel (0) target = $region25
    $region24: #{tpu_custom_call.1} parent=1 // pred_region
      _
    $region25: #{tpu_custom_call.1} parent=1 // pred_fallthru
      _
    // Predicated region
    $region26: #{tpu_custom_call.1} parent=1 // pred_check
      _
    $region27: #{tpu_custom_call.1} parent=1 // pred_check_branch
      %30 = sbr.rel (0) target = $region29
    $region28: #{tpu_custom_call.1} parent=1 // pred_region
      _
    $region29: #{tpu_custom_call.1} parent=1 // pred_fallthru
      _
    // Predicated region
    $region30: #{tpu_custom_call.1} parent=1 // pred_check
      _
    $region31: #{tpu_custom_call.1} parent=1 // pred_check_branch
      %32 = sbr.rel (0) target = $region33
    $region32: #{tpu_custom_call.1} parent=1 // pred_region
      _
    $region33: #{tpu_custom_call.1} parent=1 // pred_fallthru
      _
    // Predicated region
    $region34: #{tpu_custom_call.1} parent=1 // pred_check
      _
    $region35: #{tpu_custom_call.1} parent=1 // pred_check_branch
      %34 = sbr.rel (0) target = $region37
    $region36: #{tpu_custom_call.1} parent=1 // pred_region
      _
    $region37: #{tpu_custom_call.1} parent=1 // pred_fallthru
      _
    %v35 = vld [vmem:[%s2] sm:$0xff]
    %v36 = vld [vmem:[%s2 + $0x8] sm:$0xff]
    %v37 = vld [vmem:[%s2 + $0x10] sm:$0xff]
    %v38 = vld [vmem:[%s2 + $0x18] sm:$0xff]
    %v39 = vld [vmem:[%s0] sm:$0xff]
    %v40 = vld [vmem:[%s3] sm:$0xff]
    %v41 = vld [vmem:[%s3 + $0x8] sm:$0xff]
    %v42 = vld [vmem:[%s3 + $0x10] sm:$0xff]
    %v43 = vld [vmem:[%s3 + $0x18] sm:$0xff]
    %v44 = vld [vmem:[%s1] sm:$0xff]
    %vm45 = vcmask 31744
    %v47 = vsel %vm45, %v40, 0
    %v50 = vsel %vm45, %v41, 0
    %v53 = vsel %vm45, %v42, 0
    %v56 = vsel %vm45, %v43, 0
    %v59 = vsel %vm45, %v44, 0
    %61 = vmatpush.xpose.msra.mxu0 0.0
    %62 = vmatpush.xpose.msra.mxu0 0.0
    %63 = vmatpush.xpose.msra.mxu0 0.0
    %64 = vmatpush.xpose.msra.mxu0 0.0
    %65 = vmatpush.xpose.msra.mxu0 0.0
    %66 = vmatpush.xpose.msra.mxu0 0.0
    %67 = vmatpush.xpose.msra.mxu0 0.0
    %68 = vmatpush.xpose.msra.mxu0 0.0
    %69 = vmatpush.xpose.msra.mxu0 0.0
    %70 = vmatpush.xpose.msra.mxu0 0.0
    %71 = vmatpush.xpose.msra.mxu0 0.0
    %72 = vmatpush.xpose.msra.mxu0 0.0
    %73 = vmatpush.xpose.msra.mxu0 0.0
    %74 = vmatpush.xpose.msra.mxu0 0.0
    %75 = vmatpush.xpose.msra.mxu0 0.0
    %76 = vmatpush.xpose.msra.mxu0 %v59
    %77 = vmatmul.f32.gmra.mxu0 %v47
    %v78 = vpop.f32.mrf.mxu0
    %v79 = vadd.f32 0.0, %v78
    %80 = vmatmul.f32.gmra.mxu0 %v50
    %v81 = vpop.f32.mrf.mxu0
    %v82 = vadd.f32 0.0, %v81
    %83 = vmatmul.f32.gmra.mxu0 %v53
    %v84 = vpop.f32.mrf.mxu0
    %v85 = vadd.f32 0.0, %v84
    %86 = vmatmul.f32.gmra.mxu0 %v56
    %v87 = vpop.f32.mrf.mxu0
    %v88 = vadd.f32 0.0, %v87
    %89 = vdwg.mxu0
    %v91 = vsel %vm45, %v35, 0
    %v94 = vsel %vm45, %v36, 0
    %v97 = vsel %vm45, %v37, 0
    %v100 = vsel %vm45, %v38, 0
    %v103 = vsel %vm45, %v39, 0
    %105 = vmatpush.xpose.msra.mxu0 0.0
    %106 = vmatpush.xpose.msra.mxu0 0.0
    %107 = vmatpush.xpose.msra.mxu0 0.0
    %108 = vmatpush.xpose.msra.mxu0 0.0
    %109 = vmatpush.xpose.msra.mxu0 0.0
    %110 = vmatpush.xpose.msra.mxu0 0.0
    %111 = vmatpush.xpose.msra.mxu0 0.0
    %112 = vmatpush.xpose.msra.mxu0 0.0
    %113 = vmatpush.xpose.msra.mxu0 0.0
    %114 = vmatpush.xpose.msra.mxu0 0.0
    %115 = vmatpush.xpose.msra.mxu0 0.0
    %116 = vmatpush.xpose.msra.mxu0 0.0
    %117 = vmatpush.xpose.msra.mxu0 0.0
    %118 = vmatpush.xpose.msra.mxu0 0.0
    %119 = vmatpush.xpose.msra.mxu0 0.0
    %120 = vmatpush.xpose.msra.mxu0 %v103
    %121 = vmatmul.f32.gmra.mxu0 %v91
    %v122 = vpop.f32.mrf.mxu0
    %v123 = vadd.f32 %v79, %v122
    %124 = vmatmul.f32.gmra.mxu0 %v94
    %v125 = vpop.f32.mrf.mxu0
    %v126 = vadd.f32 %v82, %v125
    %127 = vmatmul.f32.gmra.mxu0 %v97
    %v128 = vpop.f32.mrf.mxu0
    %v129 = vadd.f32 %v85, %v128
    %130 = vmatmul.f32.gmra.mxu0 %v100
    %v131 = vpop.f32.mrf.mxu0
    %v132 = vadd.f32 %v88, %v131
    %133 = vdwg.mxu0
    %v134 = vld [vmem:[%s4] sm:$0xff]
    %v135 = vld [vmem:[%s4 + $0x8] sm:$0xff]
    %v136 = vld [vmem:[%s4 + $0x10] sm:$0xff]
    %v137 = vld [vmem:[%s4 + $0x18] sm:$0xff]
    %139 = vset.pattern.permute.xlu0 0
    %140 = vperm.xlu0 %139, %v134
    %v141 = vpop.permute.xlu0 %140
    %144 = vset.pattern.permute.xlu0 0
    %145 = vperm.xlu0 %144, %v135
    %v146 = vpop.permute.xlu0 %145
    %149 = vset.pattern.permute.xlu0 0
    %150 = vperm.xlu0 %149, %v136
    %v151 = vpop.permute.xlu0 %150
    %154 = vset.pattern.permute.xlu0 0
    %155 = vperm.xlu0 %154, %v137
    %v156 = vpop.permute.xlu0 %155
    %v158 = vadd.f32 %v123, %v141
    %v159 = vadd.f32 %v126, %v146
    %v160 = vadd.f32 %v129, %v151
    %v161 = vadd.f32 %v132, %v156
    %v162 = vmax.f32 %v158, 0.0
    %v163 = vmax.f32 %v159, 0.0
    %v164 = vmax.f32 %v160, 0.0
    %v165 = vmax.f32 %v161, 0.0
    %v166 = vld [vmem:[%s5] sm:$0xff]
    %v167 = vld [vmem:[%s5 + $0x8] sm:$0xff]
    %v168 = vld [vmem:[%s5 + $0x10] sm:$0xff]
    %v169 = vld [vmem:[%s5 + $0x18] sm:$0xff]
    %v170 = vld [vmem:[%s6] sm:$0xff]
    %v171 = vld [vmem:[%s6 + $0x8] sm:$0xff]
    %v172 = vld [vmem:[%s6 + $0x10] sm:$0xff]
    %v173 = vld [vmem:[%s6 + $0x18] sm:$0xff]
    %175 = vset.pattern.permute.xlu0 0
    %176 = vperm.xlu0 %175, %v170
    %v177 = vpop.permute.xlu0 %176
    %180 = vset.pattern.permute.xlu0 0
    %181 = vperm.xlu0 %180, %v171
    %v182 = vpop.permute.xlu0 %181
    %185 = vset.pattern.permute.xlu0 0
    %186 = vperm.xlu0 %185, %v172
    %v187 = vpop.permute.xlu0 %186
    %190 = vset.pattern.permute.xlu0 0
    %191 = vperm.xlu0 %190, %v173
    %v192 = vpop.permute.xlu0 %191
    %vm194 = vcmask 261120
    %v196 = vsel %vm194, %v166, 0
    %v199 = vsel %vm194, %v167, 0
    %v202 = vsel %vm194, %v168, 0
    %v205 = vsel %vm194, %v169, 0
    %207 = vmatpush.msra.mxu0 0.0
    %208 = vmatpush.msra.mxu0 0.0
    %209 = vmatpush.msra.mxu0 0.0
    %210 = vmatpush.msra.mxu0 0.0
    %211 = vmatpush.msra.mxu0 0.0
    %212 = vmatpush.msra.mxu0 0.0
    %213 = vmatpush.msra.mxu0 0.0
    %214 = vmatpush.msra.mxu0 0.0
    %215 = vmatpush.msra.mxu0 0.0
    %216 = vmatpush.msra.mxu0 0.0
    %217 = vmatpush.msra.mxu0 0.0
    %218 = vmatpush.msra.mxu0 0.0
    %219 = vmatpush.msra.mxu0 %v165
    %220 = vmatpush.msra.mxu0 %v164
    %221 = vmatpush.msra.mxu0 %v163
    %222 = vmatpush.msra.mxu0 %v162
    %223 = vmatmul.f32.gmra.mxu0 %v196
    %v224 = vpop.f32.mrf.mxu0
    %v225 = vadd.f32 %v177, %v224
    %226 = vmatmul.f32.gmra.mxu0 %v199
    %v227 = vpop.f32.mrf.mxu0
    %v228 = vadd.f32 %v182, %v227
    %229 = vmatmul.f32.gmra.mxu0 %v202
    %v230 = vpop.f32.mrf.mxu0
    %v231 = vadd.f32 %v187, %v230
    %232 = vmatmul.f32.gmra.mxu0 %v205
    %v233 = vpop.f32.mrf.mxu0
    %v234 = vadd.f32 %v192, %v233
    %235 = vdwg.mxu0
    %v236 = vmax.f32 %v225, 0.0
    %v237 = vmax.f32 %v228, 0.0
    %v238 = vmax.f32 %v231, 0.0
    %v239 = vmax.f32 %v234, 0.0
    %v240 = vld [vmem:[%s7] sm:$0x1]
    %v241 = vld [vmem:[#allocation2] sm:$0x1]
    %243 = vset.pattern.permute.xlu0 0
    %244 = vperm.xlu0 %243, %v241
    %v245 = vpop.permute.xlu0 %244
    %v247 = vperm.slane %v245, 0
    %v249 = vsel %vm194, %v240, 0
    %251 = vmatpush.msra.mxu0 0.0
    %252 = vmatpush.msra.mxu0 0.0
    %253 = vmatpush.msra.mxu0 0.0
    %254 = vmatpush.msra.mxu0 0.0
    %255 = vmatpush.msra.mxu0 0.0
    %256 = vmatpush.msra.mxu0 0.0
    %257 = vmatpush.msra.mxu0 0.0
    %258 = vmatpush.msra.mxu0 0.0
    %259 = vmatpush.msra.mxu0 0.0
    %260 = vmatpush.msra.mxu0 0.0
    %261 = vmatpush.msra.mxu0 0.0
    %262 = vmatpush.msra.mxu0 0.0
    %263 = vmatpush.msra.mxu0 %v239
    %264 = vmatpush.msra.mxu0 %v238
    %265 = vmatpush.msra.mxu0 %v237
    %266 = vmatpush.msra.mxu0 %v236
    %267 = vmatmul.f32.gmra.mxu0 %v249
    %v268 = vpop.f32.mrf.mxu0
    %v269 = vadd.f32 %v247, %v268
    %270 = vdwg.mxu0
    %v271 = vxor.u32 %v269, 2147483648
    %v272 = vmul.f32 %v271, 1.442695
    %v273 = vpow.pop %v272
    %v274 = vadd.f32 %v273, 1.0
    %v275 = vrcp.pop %v274
    %v276 = vmul.f32 %v274, %v275
    %v277 = vsub.f32 1.0, %v276
    %v278 = vmul.f32 %v275, %v277
    %v279 = vadd.f32 %v275, %v278
    %vm280 = vweird.f32 %v274
    %vm281 = vweird.f32 %v275
    %vm282 = vmor %vm280, %vm281
    %v283 = vsel %vm282, %v275, %v279
    %v284 = vand.u32 2147483647, %v274
    %vm285 = vcmp.eq.f32.partialorder %v284, 8.507059e+37
    %v286 = vand.u32 %v274, 2147483648
    %v287 = vor.u32 1.1754944e-38, %v286
    %v288 = vsel %vm285, %v287, %v283
    %v289 = vmul.f32 1.0, %v288
    %vm290 = vcmask 57344
    %291 = vst.msk [vmem:[#allocation3] sm:$0x1] %vm290, %v289
    // Predicated region
    $region38: #{tpu_custom_call.1} parent=1 // pred_check
      _
    $region39: #{tpu_custom_call.1} parent=1 // pred_check_branch
      %293 = sbr.rel (0) target = $region41
    $region40: #{tpu_custom_call.1} parent=1 // pred_region
      %295 = vsyncadd [#allocation4], 0
      %s297 = sshll.u32 [#allocation3], 4
      %s298 = int_to_ptr.vmem [resolvable:$true] %s297
      %s299 = sshll.u32 %s9, 4
      %s300 = int_to_ptr.hbm [resolvable:$true] %s299
      %302 = dma.vmem_to_hbm [thread:$0]  %s298, 16, %s300, [#allocation4]
    $region41: #{tpu_custom_call.1} parent=1 // pred_fallthru
      _
    // Predicated region
    $region42: #{tpu_custom_call.1} parent=1 // pred_check
      _
    $region43: #{tpu_custom_call.1} parent=1 // pred_check_branch
      %304 = sbr.rel (0) target = $region45
    $region44: #{tpu_custom_call.1} parent=1 // pred_region
      %306 = dma.done [#allocation4], 16
    $region45: #{tpu_custom_call.1} parent=1 // pred_fallthru
      _
    %307 = vsyncpa [#allocation4], 1

</llo_original>
